<compile_context>
chip_gen: v7x
topology: tpu7x:2x2x1
jax: 0.10.0
libtpu: 0.0.40
codegen_flags: <defaults>
</compile_context>

<pallas_src>
import math

import jax
import jax.numpy as jnp
from jax import lax
from jax.experimental import pallas as pl
from jax.experimental.pallas import tpu as pltpu

# ---- hyperparameters (small, consistent with the module constructor) ----
INPUT_DIM = 32
HIDDEN_DIM = 32
N_LAYERS = 2
N_COND = 8
D_COND = 16
BERT_DIM = 64   # TODO(synk): DistilBERT tokenizer + encoder (encode_prompt) have no
                # Pallas equivalent; replaced by a deterministic synthetic (B, BERT_DIM)
                # embedding standing in for bert last_hidden_state[:, 0, :].
BN_EPS = 1e-5
F32_MAX = float(jnp.finfo(jnp.float32).max)
F32_MIN = float(jnp.finfo(jnp.float32).min)

# ---- packed-weight-slab layout (row offsets, all multiples of 16) ----
KC1 = 16                     # wc1 rows padded 8 -> 16 (cond is lane-padded to match)
OFF_WC1 = 0                  # (16, 32)   real (8, 16); zero-padded rows/cols
OFF_WC2 = 16                 # (32, 32)   real (16, 16); zero-padded rows/cols
OFF_WT1 = 48                 # (32, 32)
OFF_WT2 = 80                 # (32, 32)
OFF_W0XB = 112               # (96, 32)   rows for [x ; bert]
OFF_W0C = 208                # (32, 32)   real (16, 32); zero-padded rows
OFF_W1 = 240                 # (32, 32)
SLAB_ROWS = 272

# ---- bias/scale pack rows (one (8, 32) f32 vreg) ----
ROW_BC1, ROW_BC2, ROW_BT1, ROW_BT2, ROW_B0, ROW_GAMMA, ROW_BETA, ROW_B1 = range(8)


def _gelu_tanh(x):
    # TODO(synk): tanh approximation of PyTorch's exact (erf) nn.GELU; max abs
    # deviation ~3e-3 (inside test tolerance) and tanh runs on the EUP,
    # freeing VALU slots vs. an erf polynomial.
    c = math.sqrt(2.0 / math.pi)
    return 0.5 * x * (1.0 + jnp.tanh(c * (x + 0.044715 * x * x * x)))


# --------------------------- the Pallas kernel ---------------------------
def _denoise_kernel(xb_ref, cond_ref, sincos_ref, w_ref, b_ref, out_ref):
    f32, bf16 = jnp.float32, jnp.bfloat16
    dot = lambda a, b: jnp.dot(a.astype(bf16), b.astype(bf16),
                               preferred_element_type=f32)
    bias = lambda r: b_ref[r:r + 1, :]                     # (1, 32) f32 row

    # ---- cond branch: nan_to_num(nan=-100, posinf=max, neginf=min) + MLP ----
    # (the PyTorch module explicitly passes nan=-100.0; posinf/neginf default.)
    c = cond_ref[...]
    c = jnp.where(jnp.isnan(c), f32(-100.0), c)
    c = jnp.where(c == jnp.inf, f32(F32_MAX), c)
    c = jnp.where(c == -jnp.inf, f32(F32_MIN), c)
    h_c = jnp.maximum(dot(c, w_ref[OFF_WC1:OFF_WC1 + KC1, :]) + bias(ROW_BC1), 0.0)
    cond_emb = dot(h_c, w_ref[OFF_WC2:OFF_WC2 + 32, :]) + bias(ROW_BC2)
    # cond_emb: (B, 32); columns D_COND..31 are exactly zero by construction.

    # ---- time branch: Linear / GELU(tanh) / Linear on sinusoidal embedding ----
    t1 = dot(sincos_ref[...], w_ref[OFF_WT1:OFF_WT1 + 32, :]) + bias(ROW_BT1)
    t1 = _gelu_tanh(t1)
    t_emb = dot(t1, w_ref[OFF_WT2:OFF_WT2 + 32, :]) + bias(ROW_BT2)

    # ---- main layer 0: cat(x, cond_emb, bert) @ W0 as a 2-dot accumulate ----
    acc = dot(xb_ref[...], w_ref[OFF_W0XB:OFF_W0XB + 96, :])
    acc = acc + dot(cond_emb, w_ref[OFF_W0C:OFF_W0C + 32, :])
    h = jnp.maximum(acc + bias(ROW_B0), 0.0) + t_emb       # ReLU(...) + t

    # ---- BatchNorm1d (training mode: batch stats, biased variance) ----
    # TODO(synk): running_mean/var buffer update (torch training side effect)
    # is not emulated; it does not affect the forward output.
    mean = jnp.mean(h, axis=0, keepdims=True)
    diff = h - mean
    var = jnp.mean(diff * diff, axis=0, keepdims=True)
    h = diff * lax.rsqrt(var + BN_EPS) * bias(ROW_GAMMA) + bias(ROW_BETA)

    # ---- final projection back to input_dim ----
    out_ref[...] = dot(h, w_ref[OFF_W1:OFF_W1 + 32, :]) + bias(ROW_B1)


# ------------------------------ wrapper -----------------------------------
def enriched_denoise_forward(x, t, cond, bert_emb, params):
    B = x.shape[0]
    cond = cond.reshape(-1, N_COND).astype(jnp.float32)
    cond = jnp.pad(cond, ((0, 0), (0, KC1 - N_COND)))       # lane-pad to 16 (zeros)

    # Sinusoidal position embedding (parameter-free) built in the fused XLA
    # wrapper: removes a (B,1)x(1,16) in-kernel broadcast, one DMA, and lets
    # the kernel use the un-split (32,32) wt1 in a single MXU push.
    half = HIDDEN_DIM // 2
    scale = math.log(10000.0) / (half - 1)
    freqs = jnp.exp(jnp.arange(half, dtype=jnp.float32) * -scale)
    ang = t.reshape(B, 1).astype(jnp.float32) * freqs[None, :]
    sincos = jnp.concatenate([jnp.sin(ang), jnp.cos(ang)], axis=-1)      # (B, 32)

    # Pre-concatenate x and the bert embedding (free in XLA) so layer 0 only
    # needs a 2-dot accumulate inside the kernel.
    xb = jnp.concatenate([x.astype(jnp.float32),
                          bert_emb.astype(jnp.float32)], axis=1)         # (B, 96)

    vmem = pl.BlockSpec(memory_space=pltpu.MemorySpace.VMEM)
    return pl.pallas_call(
        _denoise_kernel,
        out_shape=jax.ShapeDtypeStruct((B, INPUT_DIM), jnp.float32),
        in_specs=[vmem] * 5,
        out_specs=vmem,
    )(xb, cond, sincos, params["w_slab"], params["bias_pack"])


# -------------------- deterministic parameter init -----------------------
def init_params(key):
    ks = jax.random.split(key, 6)

    def lin(k, fan_in, fan_out):
        bound = 1.0 / math.sqrt(fan_in)
        k1, k2 = jax.random.split(k)
        w = jax.random.uniform(k1, (fan_in, fan_out), jnp.float32, -bound, bound)
        b = jax.random.uniform(k2, (fan_out,), jnp.float32, -bound, bound)
        return w, b

    # cond_mlp: Linear(n_cond, d_cond) -> ReLU -> Linear(d_cond, d_cond)
    wc1, bc1 = lin(ks[0], N_COND, D_COND)
    wc2, bc2 = lin(ks[1], D_COND, D_COND)
    # time_mlp: Linear(hidden, hidden) -> GELU -> Linear(hidden, hidden)
    wt1, bt1 = lin(ks[2], HIDDEN_DIM, HIDDEN_DIM)
    wt2, bt2 = lin(ks[3], HIDDEN_DIM, HIDDEN_DIM)
    # mlp[0]: Linear(input + d_cond + bert, hidden)
    mlp_in = INPUT_DIM + D_COND + BERT_DIM
    w0, b0 = lin(ks[4], mlp_in, HIDDEN_DIM)
    # mlp[1]: Linear(hidden, input_dim)
    w1, b1 = lin(ks[5], HIDDEN_DIM, INPUT_DIM)
    # bn[0]: PyTorch default init gamma=1, beta=0
    gamma = jnp.ones((HIDDEN_DIM,), jnp.float32)
    beta = jnp.zeros((HIDDEN_DIM,), jnp.float32)

    raw = dict(wc1=wc1, bc1=bc1, wc2=wc2, bc2=bc2, wt1=wt1, bt1=bt1, wt2=wt2,
               bt2=bt2, w0=w0, b0=b0, gamma=gamma, beta=beta, w1=w1, b1=b1)

    # ---- pack all weights into one bf16 slab (zero padding keeps math exact) --
    wc1_p = jnp.pad(wc1, ((0, KC1 - N_COND), (0, HIDDEN_DIM - D_COND)))         # (16,32)
    wc2_p = jnp.pad(wc2, ((0, HIDDEN_DIM - D_COND), (0, HIDDEN_DIM - D_COND)))  # (32,32)
    w0_x = w0[:INPUT_DIM]
    w0_c = w0[INPUT_DIM:INPUT_DIM + D_COND]
    w0_b = w0[INPUT_DIM + D_COND:]
    w0_xb = jnp.concatenate([w0_x, w0_b], axis=0)                               # (96,32)
    w0_c_p = jnp.pad(w0_c, ((0, HIDDEN_DIM - D_COND), (0, 0)))                  # (32,32)
    w_slab = jnp.concatenate([wc1_p, wc2_p, wt1, wt2, w0_xb, w0_c_p, w1],
                             axis=0).astype(jnp.bfloat16)
    assert w_slab.shape == (SLAB_ROWS, HIDDEN_DIM)

    # ---- pack every bias / BN affine into one (8, 32) f32 vreg ----
    pad32 = lambda v: jnp.pad(v, (0, HIDDEN_DIM - v.shape[0]))
    bias_pack = jnp.stack([pad32(bc1), pad32(bc2), bt1, bt2, b0, gamma, beta, b1],
                          axis=0).astype(jnp.float32)                           # (8,32)

    return dict(raw=raw, w_slab=w_slab, bias_pack=bias_pack)


# ----------------------- pure-JAX f32 reference ---------------------------
def reference_forward(x, t, cond, bert_emb, raw):
    hp = lax.Precision.HIGHEST
    dot = lambda a, b: jnp.dot(a, b, precision=hp)
    cond = cond.reshape(-1, N_COND)
    cond = jnp.where(jnp.isnan(cond), -100.0, cond)
    cond = jnp.where(cond == jnp.inf, F32_MAX, cond)
    cond = jnp.where(cond == -jnp.inf, F32_MIN, cond)
    c = jnp.maximum(dot(cond, raw["wc1"]) + raw["bc1"], 0.0)
    c = dot(c, raw["wc2"]) + raw["bc2"]

    half = HIDDEN_DIM // 2
    scale = math.log(10000.0) / (half - 1)
    freqs = jnp.exp(jnp.arange(half, dtype=jnp.float32) * -scale)
    ang = t.reshape(-1, 1).astype(jnp.float32) * freqs[None, :]
    emb = jnp.concatenate([jnp.sin(ang), jnp.cos(ang)], axis=-1)
    t1 = jax.nn.gelu(dot(emb, raw["wt1"]) + raw["bt1"], approximate=False)
    t_emb = dot(t1, raw["wt2"]) + raw["bt2"]

    h_in = jnp.concatenate([x, c, bert_emb], axis=1)
    h = jnp.maximum(dot(h_in, raw["w0"]) + raw["b0"], 0.0) + t_emb
    mean = jnp.mean(h, axis=0, keepdims=True)
    var = jnp.mean((h - mean) ** 2, axis=0, keepdims=True)
    h = (h - mean) / jnp.sqrt(var + BN_EPS) * raw["gamma"] + raw["beta"]
    return dot(h, raw["w1"]) + raw["b1"]


if __name__ == "__main__":
    key = jax.random.PRNGKey(0)
    kx, kt, kc, kb, kp = jax.random.split(key, 5)
    B = 8   # one full sublane group; (B, feat) tiles are layout-native

    x = jax.random.normal(kx, (B, INPUT_DIM), jnp.float32)
    t = jax.random.randint(kt, (B,), 0, 1000).astype(jnp.float32)
    cond = jax.random.normal(kc, (B, N_COND), jnp.float32)
    cond = cond.at[0, 0].set(jnp.nan)          # exercise the nan_to_num(nan=-100) path
    bert_emb = jax.random.normal(kb, (B, BERT_DIM), jnp.float32)
    params = init_params(kp)

    out = jax.block_until_ready(enriched_denoise_forward(x, t, cond, bert_emb, params))
    ref = reference_forward(x, t, cond, bert_emb, params["raw"])

    assert out.shape == (B, INPUT_DIM) and out.dtype == jnp.float32
    # Tolerance covers bf16 MXU operands + tanh-GELU, with the -100
    # NaN-replacement outlier (magnitude ~1e2) flowing through the cond branch
    # and BatchNorm; the reference stays full f32 / exact-erf GELU like PyTorch.
    err = float(jnp.max(jnp.abs(out - ref)))
    assert jnp.allclose(out, ref, rtol=5e-2, atol=1e-1), f"max abs err {err}"
    print("KERNEL_OK")
</pallas_src>

<mosaic_0001>
module attributes {stable_mosaic.version = 11 : i64} {
  func.func @_denoise_kernel(%arg0: memref<8x96xf32, #tpu.memory_space<vmem>>, %arg1: memref<8x16xf32, #tpu.memory_space<vmem>>, %arg2: memref<8x32xf32, #tpu.memory_space<vmem>>, %arg3: memref<272x32xbf16, #tpu.memory_space<vmem>>, %arg4: memref<8x32xf32, #tpu.memory_space<vmem>>, %arg5: memref<8x32xf32, #tpu.memory_space<vmem>>) attributes {dimension_semantics = [], scalar_prefetch = 0 : i64, scratch_operands = 0 : i64, tpu.core_type = #tpu.core_type<tc>} {
    %c0 = arith.constant 0 : index
    %c0_0 = arith.constant 0 : index
    %0 = vector.load %arg1[%c0, %c0_0] : memref<8x16xf32, #tpu.memory_space<vmem>>, vector<8x16xf32>
    %1 = arith.cmpf one, %0, %0 : vector<8x16xf32>
    %cst = arith.constant -1.000000e+02 : f32
    %2 = vector.broadcast %cst : f32 to vector<8x16xf32>
    %3 = arith.select %1, %2, %0 : vector<8x16xi1>, vector<8x16xf32>
    %cst_1 = arith.constant 0x7F800000 : f32
    %4 = vector.broadcast %cst_1 : f32 to vector<8x16xf32>
    %5 = arith.cmpf oeq, %3, %4 : vector<8x16xf32>
    %cst_2 = arith.constant 3.40282347E+38 : f32
    %6 = vector.broadcast %cst_2 : f32 to vector<8x16xf32>
    %7 = arith.select %5, %6, %3 : vector<8x16xi1>, vector<8x16xf32>
    %cst_3 = arith.constant 0xFF800000 : f32
    %8 = vector.broadcast %cst_3 : f32 to vector<8x16xf32>
    %9 = arith.cmpf oeq, %7, %8 : vector<8x16xf32>
    %cst_4 = arith.constant -3.40282347E+38 : f32
    %10 = vector.broadcast %cst_4 : f32 to vector<8x16xf32>
    %11 = arith.select %9, %10, %7 : vector<8x16xi1>, vector<8x16xf32>
    %c0_5 = arith.constant 0 : index
    %c0_6 = arith.constant 0 : index
    %12 = vector.load %arg3[%c0_5, %c0_6] : memref<272x32xbf16, #tpu.memory_space<vmem>>, vector<16x32xbf16>
    %13 = arith.truncf %11 : vector<8x16xf32> to vector<8x16xbf16>
    %cst_7 = arith.constant dense<0.000000e+00> : vector<8x32xf32>
    %14 = tpu.matmul %13, %12, %cst_7 {dimension_numbers = #tpu.dot_dimension_numbers<[1], [0], [0], [1], [0, 0, 1, 1], [], []>} : vector<8x16xbf16>, vector<16x32xbf16>, vector<8x32xf32> -> vector<8x32xf32>
    %c0_8 = arith.constant 0 : index
    %c0_9 = arith.constant 0 : index
    %15 = vector.load %arg4[%c0_8, %c0_9] : memref<8x32xf32, #tpu.memory_space<vmem>>, vector<1x32xf32>
    %16 = vector.broadcast %15 : vector<1x32xf32> to vector<8x32xf32>
    %17 = arith.addf %14, %16 : vector<8x32xf32>
    %cst_10 = arith.constant 0.000000e+00 : f32
    %18 = vector.broadcast %cst_10 : f32 to vector<8x32xf32>
    %19 = arith.maximumf %17, %18 : vector<8x32xf32>
    %c16 = arith.constant 16 : index
    %c0_11 = arith.constant 0 : index
    %20 = vector.load %arg3[%c16, %c0_11] : memref<272x32xbf16, #tpu.memory_space<vmem>>, vector<32x32xbf16>
    %21 = arith.truncf %19 : vector<8x32xf32> to vector<8x32xbf16>
    %cst_12 = arith.constant dense<0.000000e+00> : vector<8x32xf32>
    %22 = tpu.matmul %21, %20, %cst_12 {dimension_numbers = #tpu.dot_dimension_numbers<[1], [0], [0], [1], [0, 0, 1, 1], [], []>} : vector<8x32xbf16>, vector<32x32xbf16>, vector<8x32xf32> -> vector<8x32xf32>
    %c1 = arith.constant 1 : index
    %c0_13 = arith.constant 0 : index
    %23 = vector.load %arg4[%c1, %c0_13] : memref<8x32xf32, #tpu.memory_space<vmem>>, vector<1x32xf32>
    %24 = vector.broadcast %23 : vector<1x32xf32> to vector<8x32xf32>
    %25 = arith.addf %22, %24 : vector<8x32xf32>
    %c0_14 = arith.constant 0 : index
    %c0_15 = arith.constant 0 : index
    %26 = vector.load %arg2[%c0_14, %c0_15] : memref<8x32xf32, #tpu.memory_space<vmem>>, vector<8x32xf32>
    %c48 = arith.constant 48 : index
    %c0_16 = arith.constant 0 : index
    %27 = vector.load %arg3[%c48, %c0_16] : memref<272x32xbf16, #tpu.memory_space<vmem>>, vector<32x32xbf16>
    %28 = arith.truncf %26 : vector<8x32xf32> to vector<8x32xbf16>
    %cst_17 = arith.constant dense<0.000000e+00> : vector<8x32xf32>
    %29 = tpu.matmul %28, %27, %cst_17 {dimension_numbers = #tpu.dot_dimension_numbers<[1], [0], [0], [1], [0, 0, 1, 1], [], []>} : vector<8x32xbf16>, vector<32x32xbf16>, vector<8x32xf32> -> vector<8x32xf32>
    %c2 = arith.constant 2 : index
    %c0_18 = arith.constant 0 : index
    %30 = vector.load %arg4[%c2, %c0_18] : memref<8x32xf32, #tpu.memory_space<vmem>>, vector<1x32xf32>
    %31 = vector.broadcast %30 : vector<1x32xf32> to vector<8x32xf32>
    %32 = arith.addf %29, %31 : vector<8x32xf32>
    %cst_19 = arith.constant 5.000000e-01 : f32
    %33 = vector.broadcast %cst_19 : f32 to vector<8x32xf32>
    %34 = arith.mulf %33, %32 : vector<8x32xf32>
    %cst_20 = arith.constant 4.471500e-02 : f32
    %35 = vector.broadcast %cst_20 : f32 to vector<8x32xf32>
    %36 = arith.mulf %35, %32 : vector<8x32xf32>
    %37 = arith.mulf %36, %32 : vector<8x32xf32>
    %38 = arith.mulf %37, %32 : vector<8x32xf32>
    %39 = arith.addf %32, %38 : vector<8x32xf32>
    %cst_21 = arith.constant 0.797884583 : f32
    %40 = vector.broadcast %cst_21 : f32 to vector<8x32xf32>
    %41 = arith.mulf %40, %39 : vector<8x32xf32>
    %42 = math.tanh %41 : vector<8x32xf32>
    %cst_22 = arith.constant 1.000000e+00 : f32
    %43 = vector.broadcast %cst_22 : f32 to vector<8x32xf32>
    %44 = arith.addf %43, %42 : vector<8x32xf32>
    %45 = arith.mulf %34, %44 : vector<8x32xf32>
    %c80 = arith.constant 80 : index
    %c0_23 = arith.constant 0 : index
    %46 = vector.load %arg3[%c80, %c0_23] : memref<272x32xbf16, #tpu.memory_space<vmem>>, vector<32x32xbf16>
    %47 = arith.truncf %45 : vector<8x32xf32> to vector<8x32xbf16>
    %cst_24 = arith.constant dense<0.000000e+00> : vector<8x32xf32>
    %48 = tpu.matmul %47, %46, %cst_24 {dimension_numbers = #tpu.dot_dimension_numbers<[1], [0], [0], [1], [0, 0, 1, 1], [], []>} : vector<8x32xbf16>, vector<32x32xbf16>, vector<8x32xf32> -> vector<8x32xf32>
    %c3 = arith.constant 3 : index
    %c0_25 = arith.constant 0 : index
    %49 = vector.load %arg4[%c3, %c0_25] : memref<8x32xf32, #tpu.memory_space<vmem>>, vector<1x32xf32>
    %50 = vector.broadcast %49 : vector<1x32xf32> to vector<8x32xf32>
    %51 = arith.addf %48, %50 : vector<8x32xf32>
    %c0_26 = arith.constant 0 : index
    %c0_27 = arith.constant 0 : index
    %52 = vector.load %arg0[%c0_26, %c0_27] : memref<8x96xf32, #tpu.memory_space<vmem>>, vector<8x96xf32>
    %c112 = arith.constant 112 : index
    %c0_28 = arith.constant 0 : index
    %53 = vector.load %arg3[%c112, %c0_28] : memref<272x32xbf16, #tpu.memory_space<vmem>>, vector<96x32xbf16>
    %54 = arith.truncf %52 : vector<8x96xf32> to vector<8x96xbf16>
    %cst_29 = arith.constant dense<0.000000e+00> : vector<8x32xf32>
    %55 = tpu.matmul %54, %53, %cst_29 {dimension_numbers = #tpu.dot_dimension_numbers<[1], [0], [0], [1], [0, 0, 1, 1], [], []>} : vector<8x96xbf16>, vector<96x32xbf16>, vector<8x32xf32> -> vector<8x32xf32>
    %c208 = arith.constant 208 : index
    %c0_30 = arith.constant 0 : index
    %56 = vector.load %arg3[%c208, %c0_30] : memref<272x32xbf16, #tpu.memory_space<vmem>>, vector<32x32xbf16>
    %57 = arith.truncf %25 : vector<8x32xf32> to vector<8x32xbf16>
    %cst_31 = arith.constant dense<0.000000e+00> : vector<8x32xf32>
    %58 = tpu.matmul %57, %56, %cst_31 {dimension_numbers = #tpu.dot_dimension_numbers<[1], [0], [0], [1], [0, 0, 1, 1], [], []>} : vector<8x32xbf16>, vector<32x32xbf16>, vector<8x32xf32> -> vector<8x32xf32>
    %59 = arith.addf %55, %58 : vector<8x32xf32>
    %c4 = arith.constant 4 : index
    %c0_32 = arith.constant 0 : index
    %60 = vector.load %arg4[%c4, %c0_32] : memref<8x32xf32, #tpu.memory_space<vmem>>, vector<1x32xf32>
    %61 = vector.broadcast %60 : vector<1x32xf32> to vector<8x32xf32>
    %62 = arith.addf %59, %61 : vector<8x32xf32>
    %cst_33 = arith.constant 0.000000e+00 : f32
    %63 = vector.broadcast %cst_33 : f32 to vector<8x32xf32>
    %64 = arith.maximumf %62, %63 : vector<8x32xf32>
    %65 = arith.addf %64, %51 : vector<8x32xf32>
    %cst_34 = arith.constant dense<0.000000e+00> : vector<32xf32>
    %66 = vector.multi_reduction <add>, %65, %cst_34 [0] : vector<8x32xf32> to vector<32xf32>
    %67 = vector.shape_cast %66 : vector<32xf32> to vector<1x32xf32>
    %cst_35 = arith.constant 8.000000e+00 : f32
    %68 = vector.broadcast %cst_35 : f32 to vector<1x32xf32>
    %69 = arith.divf %67, %68 : vector<1x32xf32>
    %70 = vector.broadcast %69 : vector<1x32xf32> to vector<8x32xf32>
    %71 = arith.subf %65, %70 : vector<8x32xf32>
    %72 = arith.mulf %71, %71 : vector<8x32xf32>
    %cst_36 = arith.constant dense<0.000000e+00> : vector<32xf32>
    %73 = vector.multi_reduction <add>, %72, %cst_36 [0] : vector<8x32xf32> to vector<32xf32>
    %74 = vector.shape_cast %73 : vector<32xf32> to vector<1x32xf32>
    %cst_37 = arith.constant 8.000000e+00 : f32
    %75 = vector.broadcast %cst_37 : f32 to vector<1x32xf32>
    %76 = arith.divf %74, %75 : vector<1x32xf32>
    %cst_38 = arith.constant 9.99999974E-6 : f32
    %77 = vector.broadcast %cst_38 : f32 to vector<1x32xf32>
    %78 = arith.addf %76, %77 : vector<1x32xf32>
    %79 = math.rsqrt %78 : vector<1x32xf32>
    %80 = vector.broadcast %79 : vector<1x32xf32> to vector<8x32xf32>
    %81 = arith.mulf %71, %80 : vector<8x32xf32>
    %c5 = arith.constant 5 : index
    %c0_39 = arith.constant 0 : index
    %82 = vector.load %arg4[%c5, %c0_39] : memref<8x32xf32, #tpu.memory_space<vmem>>, vector<1x32xf32>
    %83 = vector.broadcast %82 : vector<1x32xf32> to vector<8x32xf32>
    %84 = arith.mulf %81, %83 : vector<8x32xf32>
    %c6 = arith.constant 6 : index
    %c0_40 = arith.constant 0 : index
    %85 = vector.load %arg4[%c6, %c0_40] : memref<8x32xf32, #tpu.memory_space<vmem>>, vector<1x32xf32>
    %86 = vector.broadcast %85 : vector<1x32xf32> to vector<8x32xf32>
    %87 = arith.addf %84, %86 : vector<8x32xf32>
    %c240 = arith.constant 240 : index
    %c0_41 = arith.constant 0 : index
    %88 = vector.load %arg3[%c240, %c0_41] : memref<272x32xbf16, #tpu.memory_space<vmem>>, vector<32x32xbf16>
    %89 = arith.truncf %87 : vector<8x32xf32> to vector<8x32xbf16>
    %cst_42 = arith.constant dense<0.000000e+00> : vector<8x32xf32>
    %90 = tpu.matmul %89, %88, %cst_42 {dimension_numbers = #tpu.dot_dimension_numbers<[1], [0], [0], [1], [0, 0, 1, 1], [], []>} : vector<8x32xbf16>, vector<32x32xbf16>, vector<8x32xf32> -> vector<8x32xf32>
    %c7 = arith.constant 7 : index
    %c0_43 = arith.constant 0 : index
    %91 = vector.load %arg4[%c7, %c0_43] : memref<8x32xf32, #tpu.memory_space<vmem>>, vector<1x32xf32>
    %92 = vector.broadcast %91 : vector<1x32xf32> to vector<8x32xf32>
    %93 = arith.addf %90, %92 : vector<8x32xf32>
    %c0_44 = arith.constant 0 : index
    %c0_45 = arith.constant 0 : index
    %94 = vector.load %arg5[%c0_44, %c0_45] : memref<8x32xf32, #tpu.memory_space<vmem>>, vector<8x32xf32>
    tpu.vector_store %arg5[%c0_44, %c0_45], %93 {strides = array<i32>} : memref<8x32xf32, #tpu.memory_space<vmem>>, vector<8x32xf32>,
    return
  }
}

</mosaic_0001>

<llo_original>
// kernel: tpu_custom_call.1
$region0: #{tpu_custom_call.1}
  #allocation0 [shape = 'u32[]', space=smem, size = 0x4, offset = 0x4, fixed_abs, tag = 'smem constant byte address 0x4 - core index']
  #allocation1 [shape = 'u32[144,128]{1,0:T(1,128)}', space=vmem, size = 0x12000, scoped, tag = 'internal scratch']
  %s0 = inlined_call_operand.vmem [shape: f32[8,96], index: 0, kind: input, shape index: {}]
  %s1 = inlined_call_operand.vmem [shape: f32[8,16], index: 1, kind: input, shape index: {}]
  %s2 = inlined_call_operand.vmem [shape: f32[8,32], index: 2, kind: input, shape index: {}]
  %s3 = inlined_call_operand.vmem [shape: bf16[272,32], index: 3, kind: input, shape index: {}]
  %s4 = inlined_call_operand.vmem [shape: f32[8,32], index: 4, kind: input, shape index: {}]
  %s5 = inlined_call_operand.hbm [shape: f32[8,32], index: 5, kind: output, shape index: {}]
  %s6 = sld [smem:[#allocation0]]
  $region30: #{tpu_custom_call.1} parent=0
    _
  %s8 = ssub.s32 1, %s6
  %s9 = scalar_select 0, %s8, %s6
  $region1: #{tpu_custom_call.1} parent=0
    #allocation2 [shape = 'u8[4096]{0}', space=vmem, size = 0x1000, scoped, tag = 'output window, operand 0, single buffered']
    #allocation3 [shape = 's32[1]{0}', space=sflag, size = 0x4, scoped, tag = 'scoped memory for tpu_custom_call.1']
    %10 = vsyncpa [#allocation3], 0
    // Predicated region
    $region2: #{tpu_custom_call.1} parent=1 // pred_check
      _
    $region3: #{tpu_custom_call.1} parent=1 // pred_check_branch
      %12 = sbr.rel (0) target = $region5
    $region4: #{tpu_custom_call.1} parent=1 // pred_region
      _
    $region5: #{tpu_custom_call.1} parent=1 // pred_fallthru
      _
    // Predicated region
    $region6: #{tpu_custom_call.1} parent=1 // pred_check
      _
    $region7: #{tpu_custom_call.1} parent=1 // pred_check_branch
      %14 = sbr.rel (0) target = $region9
    $region8: #{tpu_custom_call.1} parent=1 // pred_region
      _
    $region9: #{tpu_custom_call.1} parent=1 // pred_fallthru
      _
    // Predicated region
    $region10: #{tpu_custom_call.1} parent=1 // pred_check
      _
    $region11: #{tpu_custom_call.1} parent=1 // pred_check_branch
      %16 = sbr.rel (0) target = $region13
    $region12: #{tpu_custom_call.1} parent=1 // pred_region
      _
    $region13: #{tpu_custom_call.1} parent=1 // pred_fallthru
      _
    // Predicated region
    $region14: #{tpu_custom_call.1} parent=1 // pred_check
      _
    $region15: #{tpu_custom_call.1} parent=1 // pred_check_branch
      %18 = sbr.rel (0) target = $region17
    $region16: #{tpu_custom_call.1} parent=1 // pred_region
      _
    $region17: #{tpu_custom_call.1} parent=1 // pred_fallthru
      _
    // Predicated region
    $region18: #{tpu_custom_call.1} parent=1 // pred_check
      _
    $region19: #{tpu_custom_call.1} parent=1 // pred_check_branch
      %20 = sbr.rel (0) target = $region21
    $region20: #{tpu_custom_call.1} parent=1 // pred_region
      _
    $region21: #{tpu_custom_call.1} parent=1 // pred_fallthru
      _
    %v22 = vld [vmem:[%s1] sm:$0xff]
    %vm23 = vcmp.ne.f32.partialorder %v22, %v22
    %v24 = vsel %vm23, -100.0, %v22
    %vm25 = vcmp.eq.f32.partialorder %v24, inf
    %v26 = vsel %vm25, 3.4028235e+38, %v24
    %vm27 = vcmp.eq.f32.partialorder %v26, -inf
    %v28 = vsel %vm27, -3.4028235e+38, %v26
    %v29 = vld [vmem:[%s3] sm:$0xf]
    %v30 = vld [vmem:[%s3 + $0x4] sm:$0xf]
    %v31 = vpack.c.bf16 %v28, %v28
    %v32 = vld [vmem:[%s4] sm:$0x1]
    %v33 = vlaneseq
    %v34 = vshrl.u32 %v33, 7
    %v35 = vsub.s32 0, %v34
    %v36 = vrot.slane %v32, %v35
    %v39 = vunpack.c.l.b16 %v29
    %v40 = vunpack.c.l.b16 %v30
    %v41 = vpack.c.b16 %v40, %v39
    %vm43 = vcmask 130048
    %v45 = vsel %vm43, %v31, 0
    %47 = vmatprep.subr.bf16.mxu0 0
    %48 = vmatpush1.bf16.msra.mxu0 %v41
    %49 = vmatprep.subr.bf16.mxu0 0
    %50 = vmatpush1.bf16.msra.mxu0 0
    %51 = vmatprep.subr.bf16.mxu0 0
    %52 = vmatpush1.bf16.msra.mxu0 0
    %53 = vmatprep.subr.bf16.mxu0 0
    %54 = vmatpush1.bf16.msra.mxu0 0
    %55 = vmatprep.subr.bf16.mxu0 0
    %56 = vmatpush1.bf16.msra.mxu0 0
    %57 = vmatprep.subr.bf16.mxu0 0
    %58 = vmatpush1.bf16.msra.mxu0 0
    %59 = vmatprep.subr.bf16.mxu0 0
    %60 = vmatpush1.bf16.msra.mxu0 0
    %61 = vmatprep.subr.bf16.mxu0 0
    %62 = vmatpush1.bf16.msra.mxu0 0
    %63 = vmatprep.subr.bf16.mxu0 0
    %64 = vmatpush1.bf16.msra.mxu0 0
    %65 = vmatprep.subr.bf16.mxu0 0
    %66 = vmatpush1.bf16.msra.mxu0 0
    %67 = vmatprep.subr.bf16.mxu0 0
    %68 = vmatpush1.bf16.msra.mxu0 0
    %69 = vmatprep.subr.bf16.mxu0 0
    %70 = vmatpush1.bf16.msra.mxu0 0
    %71 = vmatprep.subr.bf16.mxu0 0
    %72 = vmatpush1.bf16.msra.mxu0 0
    %73 = vmatprep.subr.bf16.mxu0 0
    %74 = vmatpush1.bf16.msra.mxu0 0
    %75 = vmatprep.subr.bf16.mxu0 0
    %76 = vmatpush1.bf16.msra.mxu0 0
    %77 = vmatprep.subr.bf16.mxu0 0
    %78 = vmatpush1.bf16.msra.mxu0 0
    %79 = vmatprep.mubr.bf16.mxu0 0
    %80 = vmatmul.mubr.bf16.gmra.mrb[0].mxu0 %v45
    %v81 = vpop.f32.mrb[0].mxu0
    %v82 = vadd.f32 %v36, %v81
    %v83 = vpop.f32.mrb[0].mxu0
    %v84 = vpop.f32.mrb[0].mxu0
    %v85 = vpop.f32.mrb[0].mxu0
    %86 = vdwg.mxu0
    %v87 = vmax.f32 %v82, 0.0
    %v88 = vld [vmem:[%s3 + $0x8] sm:$0xf]
    %v89 = vld [vmem:[%s3 + $0xc] sm:$0xf]
    %v90 = vld [vmem:[%s3 + $0x10] sm:$0xf]
    %v91 = vld [vmem:[%s3 + $0x14] sm:$0xf]
    %v92 = vpack.c.bf16 %v87, %v87
    %v93 = vld [vmem:[%s4 + $0x1] sm:$0x1]
    %v94 = vlaneseq
    %v95 = vshrl.u32 %v94, 7
    %v96 = vsub.s32 0, %v95
    %v97 = vrot.slane %v93, %v96
    %v102 = vunpack.c.l.b16 %v88
    %v103 = vunpack.c.l.b16 %v89
    %v104 = vunpack.c.l.b16 %v90
    %v105 = vunpack.c.l.b16 %v91
    %v106 = vpack.c.b16 %v103, %v102
    %v107 = vpack.c.b16 %v105, %v104
    %vm110 = vcmask 261120
    %v112 = vsel %vm110, %v92, 0
    %114 = vmatprep.subr.bf16.mxu0 0
    %115 = vmatpush1.bf16.msra.mxu0 %v106
    %116 = vmatprep.subr.bf16.mxu0 0
    %117 = vmatpush1.bf16.msra.mxu0 %v107
    %118 = vmatprep.subr.bf16.mxu0 0
    %119 = vmatpush1.bf16.msra.mxu0 0
    %120 = vmatprep.subr.bf16.mxu0 0
    %121 = vmatpush1.bf16.msra.mxu0 0
    %122 = vmatprep.subr.bf16.mxu0 0
    %123 = vmatpush1.bf16.msra.mxu0 0
    %124 = vmatprep.subr.bf16.mxu0 0
    %125 = vmatpush1.bf16.msra.mxu0 0
    %126 = vmatprep.subr.bf16.mxu0 0
    %127 = vmatpush1.bf16.msra.mxu0 0
    %128 = vmatprep.subr.bf16.mxu0 0
    %129 = vmatpush1.bf16.msra.mxu0 0
    %130 = vmatprep.subr.bf16.mxu0 0
    %131 = vmatpush1.bf16.msra.mxu0 0
    %132 = vmatprep.subr.bf16.mxu0 0
    %133 = vmatpush1.bf16.msra.mxu0 0
    %134 = vmatprep.subr.bf16.mxu0 0
    %135 = vmatpush1.bf16.msra.mxu0 0
    %136 = vmatprep.subr.bf16.mxu0 0
    %137 = vmatpush1.bf16.msra.mxu0 0
    %138 = vmatprep.subr.bf16.mxu0 0
    %139 = vmatpush1.bf16.msra.mxu0 0
    %140 = vmatprep.subr.bf16.mxu0 0
    %141 = vmatpush1.bf16.msra.mxu0 0
    %142 = vmatprep.subr.bf16.mxu0 0
    %143 = vmatpush1.bf16.msra.mxu0 0
    %144 = vmatprep.subr.bf16.mxu0 0
    %145 = vmatpush1.bf16.msra.mxu0 0
    %146 = vmatprep.mubr.bf16.mxu0 0
    %147 = vmatmul.mubr.bf16.gmra.mrb[0].mxu0 %v112
    %v148 = vpop.f32.mrb[0].mxu0
    %v149 = vadd.f32 %v97, %v148
    %v150 = vpop.f32.mrb[0].mxu0
    %v151 = vpop.f32.mrb[0].mxu0
    %v152 = vpop.f32.mrb[0].mxu0
    %153 = vdwg.mxu0
    %v154 = vld [vmem:[%s2] sm:$0xff]
    %v155 = vld [vmem:[%s3 + $0x18] sm:$0xf]
    %v156 = vld [vmem:[%s3 + $0x1c] sm:$0xf]
    %v157 = vld [vmem:[%s3 + $0x20] sm:$0xf]
    %v158 = vld [vmem:[%s3 + $0x24] sm:$0xf]
    %v159 = vpack.c.bf16 %v154, %v154
    %v160 = vld [vmem:[%s4 + $0x2] sm:$0x1]
    %v161 = vlaneseq
    %v162 = vshrl.u32 %v161, 7
    %v163 = vsub.s32 0, %v162
    %v164 = vrot.slane %v160, %v163
    %v169 = vunpack.c.l.b16 %v155
    %v170 = vunpack.c.l.b16 %v156
    %v171 = vunpack.c.l.b16 %v157
    %v172 = vunpack.c.l.b16 %v158
    %v173 = vpack.c.b16 %v170, %v169
    %v174 = vpack.c.b16 %v172, %v171
    %v178 = vsel %vm110, %v159, 0
    %180 = vmatprep.subr.bf16.mxu0 0
    %181 = vmatpush1.bf16.msra.mxu0 %v173
    %182 = vmatprep.subr.bf16.mxu0 0
    %183 = vmatpush1.bf16.msra.mxu0 %v174
    %184 = vmatprep.subr.bf16.mxu0 0
    %185 = vmatpush1.bf16.msra.mxu0 0
    %186 = vmatprep.subr.bf16.mxu0 0
    %187 = vmatpush1.bf16.msra.mxu0 0
    %188 = vmatprep.subr.bf16.mxu0 0
    %189 = vmatpush1.bf16.msra.mxu0 0
    %190 = vmatprep.subr.bf16.mxu0 0
    %191 = vmatpush1.bf16.msra.mxu0 0
    %192 = vmatprep.subr.bf16.mxu0 0
    %193 = vmatpush1.bf16.msra.mxu0 0
    %194 = vmatprep.subr.bf16.mxu0 0
    %195 = vmatpush1.bf16.msra.mxu0 0
    %196 = vmatprep.subr.bf16.mxu0 0
    %197 = vmatpush1.bf16.msra.mxu0 0
    %198 = vmatprep.subr.bf16.mxu0 0
    %199 = vmatpush1.bf16.msra.mxu0 0
    %200 = vmatprep.subr.bf16.mxu0 0
    %201 = vmatpush1.bf16.msra.mxu0 0
    %202 = vmatprep.subr.bf16.mxu0 0
    %203 = vmatpush1.bf16.msra.mxu0 0
    %204 = vmatprep.subr.bf16.mxu0 0
    %205 = vmatpush1.bf16.msra.mxu0 0
    %206 = vmatprep.subr.bf16.mxu0 0
    %207 = vmatpush1.bf16.msra.mxu0 0
    %208 = vmatprep.subr.bf16.mxu0 0
    %209 = vmatpush1.bf16.msra.mxu0 0
    %210 = vmatprep.subr.bf16.mxu0 0
    %211 = vmatpush1.bf16.msra.mxu0 0
    %212 = vmatprep.mubr.bf16.mxu0 0
    %213 = vmatmul.mubr.bf16.gmra.mrb[0].mxu0 %v178
    %v214 = vpop.f32.mrb[0].mxu0
    %v215 = vadd.f32 %v164, %v214
    %v216 = vpop.f32.mrb[0].mxu0
    %v217 = vpop.f32.mrb[0].mxu0
    %v218 = vpop.f32.mrb[0].mxu0
    %219 = vdwg.mxu0
    %v220 = vmul.f32 %v215, 0.5
    %v221 = vmul.f32 %v215, 0.044715
    %v222 = vmul.f32 %v221, %v215
    %v223 = vmul.f32 %v222, %v215
    %v224 = vadd.f32 %v215, %v223
    %v225 = vmul.f32 %v224, 0.7978846
    %v226 = vtanh.pop %v225
    %v227 = vadd.f32 %v226, 1.0
    %v228 = vmul.f32 %v220, %v227
    %v229 = vld [vmem:[%s3 + $0x28] sm:$0xf]
    %v230 = vld [vmem:[%s3 + $0x2c] sm:$0xf]
    %v231 = vld [vmem:[%s3 + $0x30] sm:$0xf]
    %v232 = vld [vmem:[%s3 + $0x34] sm:$0xf]
    %v233 = vpack.c.bf16 %v228, %v228
    %v234 = vld [vmem:[%s4 + $0x3] sm:$0x1]
    %v235 = vlaneseq
    %v236 = vshrl.u32 %v235, 7
    %v237 = vsub.s32 0, %v236
    %v238 = vrot.slane %v234, %v237
    %v243 = vunpack.c.l.b16 %v229
    %v244 = vunpack.c.l.b16 %v230
    %v245 = vunpack.c.l.b16 %v231
    %v246 = vunpack.c.l.b16 %v232
    %v247 = vpack.c.b16 %v244, %v243
    %v248 = vpack.c.b16 %v246, %v245
    %v252 = vsel %vm110, %v233, 0
    %254 = vmatprep.subr.bf16.mxu0 0
    %255 = vmatpush1.bf16.msra.mxu0 %v247
    %256 = vmatprep.subr.bf16.mxu0 0
    %257 = vmatpush1.bf16.msra.mxu0 %v248
    %258 = vmatprep.subr.bf16.mxu0 0
    %259 = vmatpush1.bf16.msra.mxu0 0
    %260 = vmatprep.subr.bf16.mxu0 0
    %261 = vmatpush1.bf16.msra.mxu0 0
    %262 = vmatprep.subr.bf16.mxu0 0
    %263 = vmatpush1.bf16.msra.mxu0 0
    %264 = vmatprep.subr.bf16.mxu0 0
    %265 = vmatpush1.bf16.msra.mxu0 0
    %266 = vmatprep.subr.bf16.mxu0 0
    %267 = vmatpush1.bf16.msra.mxu0 0
    %268 = vmatprep.subr.bf16.mxu0 0
    %269 = vmatpush1.bf16.msra.mxu0 0
    %270 = vmatprep.subr.bf16.mxu0 0
    %271 = vmatpush1.bf16.msra.mxu0 0
    %272 = vmatprep.subr.bf16.mxu0 0
    %273 = vmatpush1.bf16.msra.mxu0 0
    %274 = vmatprep.subr.bf16.mxu0 0
    %275 = vmatpush1.bf16.msra.mxu0 0
    %276 = vmatprep.subr.bf16.mxu0 0
    %277 = vmatpush1.bf16.msra.mxu0 0
    %278 = vmatprep.subr.bf16.mxu0 0
    %279 = vmatpush1.bf16.msra.mxu0 0
    %280 = vmatprep.subr.bf16.mxu0 0
    %281 = vmatpush1.bf16.msra.mxu0 0
    %282 = vmatprep.subr.bf16.mxu0 0
    %283 = vmatpush1.bf16.msra.mxu0 0
    %284 = vmatprep.subr.bf16.mxu0 0
    %285 = vmatpush1.bf16.msra.mxu0 0
    %286 = vmatprep.mubr.bf16.mxu0 0
    %287 = vmatmul.mubr.bf16.gmra.mrb[0].mxu0 %v252
    %v288 = vpop.f32.mrb[0].mxu0
    %v289 = vadd.f32 %v238, %v288
    %v290 = vpop.f32.mrb[0].mxu0
    %v291 = vpop.f32.mrb[0].mxu0
    %v292 = vpop.f32.mrb[0].mxu0
    %293 = vdwg.mxu0
    %v294 = vld [vmem:[%s0] sm:$0xff]
    %v295 = vld [vmem:[%s3 + $0x38] sm:$0xf]
    %v296 = vld [vmem:[%s3 + $0x3c] sm:$0xf]
    %v297 = vld [vmem:[%s3 + $0x40] sm:$0xf]
    %v298 = vld [vmem:[%s3 + $0x44] sm:$0xf]
    %v299 = vld [vmem:[%s3 + $0x48] sm:$0xf]
    %v300 = vld [vmem:[%s3 + $0x4c] sm:$0xf]
    %v301 = vld [vmem:[%s3 + $0x50] sm:$0xf]
    %v302 = vld [vmem:[%s3 + $0x54] sm:$0xf]
    %v303 = vld [vmem:[%s3 + $0x58] sm:$0xf]
    %v304 = vld [vmem:[%s3 + $0x5c] sm:$0xf]
    %v305 = vld [vmem:[%s3 + $0x60] sm:$0xf]
    %v306 = vld [vmem:[%s3 + $0x64] sm:$0xf]
    %v307 = vpack.c.bf16 %v294, %v294
    %v308 = vld [vmem:[%s3 + $0x68] sm:$0xf]
    %v309 = vld [vmem:[%s3 + $0x6c] sm:$0xf]
    %v310 = vld [vmem:[%s3 + $0x70] sm:$0xf]
    %v311 = vld [vmem:[%s3 + $0x74] sm:$0xf]
    %v312 = vpack.c.bf16 %v149, %v149
    %v317 = vunpack.c.l.b16 %v308
    %v318 = vunpack.c.l.b16 %v309
    %v319 = vunpack.c.l.b16 %v310
    %v320 = vunpack.c.l.b16 %v311
    %v321 = vpack.c.b16 %v318, %v317
    %v322 = vpack.c.b16 %v320, %v319
    %v326 = vsel %vm110, %v312, 0
    %328 = vmatprep.subr.bf16.mxu0 0
    %329 = vmatpush1.bf16.msra.mxu0 %v321
    %330 = vmatprep.subr.bf16.mxu0 0
    %331 = vmatpush1.bf16.msra.mxu0 %v322
    %332 = vmatprep.subr.bf16.mxu0 0
    %333 = vmatpush1.bf16.msra.mxu0 0
    %334 = vmatprep.subr.bf16.mxu0 0
    %335 = vmatpush1.bf16.msra.mxu0 0
    %336 = vmatprep.subr.bf16.mxu0 0
    %337 = vmatpush1.bf16.msra.mxu0 0
    %338 = vmatprep.subr.bf16.mxu0 0
    %339 = vmatpush1.bf16.msra.mxu0 0
    %340 = vmatprep.subr.bf16.mxu0 0
    %341 = vmatpush1.bf16.msra.mxu0 0
    %342 = vmatprep.subr.bf16.mxu0 0
    %343 = vmatpush1.bf16.msra.mxu0 0
    %344 = vmatprep.subr.bf16.mxu0 0
    %345 = vmatpush1.bf16.msra.mxu0 0
    %346 = vmatprep.subr.bf16.mxu0 0
    %347 = vmatpush1.bf16.msra.mxu0 0
    %348 = vmatprep.subr.bf16.mxu0 0
    %349 = vmatpush1.bf16.msra.mxu0 0
    %350 = vmatprep.subr.bf16.mxu0 0
    %351 = vmatpush1.bf16.msra.mxu0 0
    %352 = vmatprep.subr.bf16.mxu0 0
    %353 = vmatpush1.bf16.msra.mxu0 0
    %354 = vmatprep.subr.bf16.mxu0 0
    %355 = vmatpush1.bf16.msra.mxu0 0
    %356 = vmatprep.subr.bf16.mxu0 0
    %357 = vmatpush1.bf16.msra.mxu0 0
    %358 = vmatprep.subr.bf16.mxu0 0
    %359 = vmatpush1.bf16.msra.mxu0 0
    %360 = vmatprep.mubr.bf16.mxu0 0
    %361 = vmatmul.mubr.bf16.gmra.mrb[0].mxu0 %v326
    %v362 = vpop.f32.mrb[0].mxu0
    %v363 = vadd.f32 0.0, %v362
    %v364 = vpop.f32.mrb[0].mxu0
    %v365 = vpop.f32.mrb[0].mxu0
    %v366 = vpop.f32.mrb[0].mxu0
    %367 = vdwg.mxu0
    %v380 = vunpack.c.l.b16 %v295
    %v381 = vunpack.c.l.b16 %v296
    %v382 = vunpack.c.l.b16 %v297
    %v383 = vunpack.c.l.b16 %v298
    %v384 = vunpack.c.l.b16 %v299
    %v385 = vunpack.c.l.b16 %v300
    %v386 = vunpack.c.l.b16 %v301
    %v387 = vunpack.c.l.b16 %v302
    %v388 = vunpack.c.l.b16 %v303
    %v389 = vunpack.c.l.b16 %v304
    %v390 = vunpack.c.l.b16 %v305
    %v391 = vunpack.c.l.b16 %v306
    %v392 = vpack.c.b16 %v381, %v380
    %v393 = vpack.c.b16 %v383, %v382
    %v394 = vpack.c.b16 %v385, %v384
    %v395 = vpack.c.b16 %v387, %v386
    %v396 = vpack.c.b16 %v389, %v388
    %v397 = vpack.c.b16 %v391, %v390
    %vm404 = vcmask 785408
    %v406 = vsel %vm404, %v307, 0
    %408 = vmatprep.subr.bf16.mxu0 0
    %409 = vmatpush1.bf16.msra.mxu0 %v392
    %410 = vmatprep.subr.bf16.mxu0 0
    %411 = vmatpush1.bf16.msra.mxu0 %v393
    %412 = vmatprep.subr.bf16.mxu0 0
    %413 = vmatpush1.bf16.msra.mxu0 %v394
    %414 = vmatprep.subr.bf16.mxu0 0
    %415 = vmatpush1.bf16.msra.mxu0 %v395
    %416 = vmatprep.subr.bf16.mxu0 0
    %417 = vmatpush1.bf16.msra.mxu0 %v396
    %418 = vmatprep.subr.bf16.mxu0 0
    %419 = vmatpush1.bf16.msra.mxu0 %v397
    %420 = vmatprep.subr.bf16.mxu0 0
    %421 = vmatpush1.bf16.msra.mxu0 0
    %422 = vmatprep.subr.bf16.mxu0 0
    %423 = vmatpush1.bf16.msra.mxu0 0
    %424 = vmatprep.subr.bf16.mxu0 0
    %425 = vmatpush1.bf16.msra.mxu0 0
    %426 = vmatprep.subr.bf16.mxu0 0
    %427 = vmatpush1.bf16.msra.mxu0 0
    %428 = vmatprep.subr.bf16.mxu0 0
    %429 = vmatpush1.bf16.msra.mxu0 0
    %430 = vmatprep.subr.bf16.mxu0 0
    %431 = vmatpush1.bf16.msra.mxu0 0
    %432 = vmatprep.subr.bf16.mxu0 0
    %433 = vmatpush1.bf16.msra.mxu0 0
    %434 = vmatprep.subr.bf16.mxu0 0
    %435 = vmatpush1.bf16.msra.mxu0 0
    %436 = vmatprep.subr.bf16.mxu0 0
    %437 = vmatpush1.bf16.msra.mxu0 0
    %438 = vmatprep.subr.bf16.mxu0 0
    %439 = vmatpush1.bf16.msra.mxu0 0
    %440 = vmatprep.mubr.bf16.mxu0 0
    %441 = vmatmul.mubr.bf16.gmra.mrb[0].mxu0 %v406
    %v442 = vpop.f32.mrb[0].mxu0
    %v443 = vadd.f32 %v363, %v442
    %v444 = vpop.f32.mrb[0].mxu0
    %v445 = vpop.f32.mrb[0].mxu0
    %v446 = vpop.f32.mrb[0].mxu0
    %447 = vdwg.mxu0
    %v448 = vld [vmem:[%s4 + $0x4] sm:$0x1]
    %v449 = vlaneseq
    %v450 = vshrl.u32 %v449, 7
    %v451 = vsub.s32 0, %v450
    %v452 = vrot.slane %v448, %v451
    %v453 = vadd.f32 %v443, %v452
    %v454 = vmax.f32 %v453, 0.0
    %v455 = vadd.f32 %v454, %v289
    %v456 = vsel %vm110, %v455, 0.0
    %v457 = vrot.slane %v456, 4
    %v458 = vadd.f32 %v456, %v457
    %v459 = vrot.slane %v458, 2
    %v460 = vadd.f32 %v458, %v459
    %v461 = vrot.slane %v460, 1
    %v462 = vadd.f32 %v460, %v461
    %v463 = vrcp.pop 8.0
    %v464 = vmul.f32 %v462, %v463
    %v465 = vsub.f32 %v455, %v464
    %v466 = vmul.f32 %v465, %v465
    %v467 = vsel %vm110, %v466, 0.0
    %v468 = vrot.slane %v467, 4
    %v469 = vadd.f32 %v467, %v468
    %v470 = vrot.slane %v469, 2
    %v471 = vadd.f32 %v469, %v470
    %v472 = vrot.slane %v471, 1
    %v473 = vadd.f32 %v471, %v472
    %v474 = vmul.f32 %v473, %v463
    %v475 = vadd.f32 %v474, 1e-05
    %v476 = vrsqrt.pop %v475
    %v477 = vmul.f32 %v465, %v476
    %v478 = vld [vmem:[%s4 + $0x5] sm:$0x1]
    %v479 = vlaneseq
    %v480 = vshrl.u32 %v479, 7
    %v481 = vsub.s32 0, %v480
    %v482 = vrot.slane %v478, %v481
    %v483 = vmul.f32 %v477, %v482
    %v484 = vld [vmem:[%s4 + $0x6] sm:$0x1]
    %v485 = vlaneseq
    %v486 = vshrl.u32 %v485, 7
    %v487 = vsub.s32 0, %v486
    %v488 = vrot.slane %v484, %v487
    %v489 = vadd.f32 %v483, %v488
    %v490 = vld [vmem:[%s3 + $0x78] sm:$0xf]
    %v491 = vld [vmem:[%s3 + $0x7c] sm:$0xf]
    %v492 = vld [vmem:[%s3 + $0x80] sm:$0xf]
    %v493 = vld [vmem:[%s3 + $0x84] sm:$0xf]
    %v494 = vpack.c.bf16 %v489, %v489
    %v495 = vld [vmem:[%s4 + $0x7] sm:$0x1]
    %v496 = vlaneseq
    %v497 = vshrl.u32 %v496, 7
    %v498 = vsub.s32 0, %v497
    %v499 = vrot.slane %v495, %v498
    %v504 = vunpack.c.l.b16 %v490
    %v505 = vunpack.c.l.b16 %v491
    %v506 = vunpack.c.l.b16 %v492
    %v507 = vunpack.c.l.b16 %v493
    %v508 = vpack.c.b16 %v505, %v504
    %v509 = vpack.c.b16 %v507, %v506
    %v513 = vsel %vm110, %v494, 0
    %515 = vmatprep.subr.bf16.mxu0 0
    %516 = vmatpush1.bf16.msra.mxu0 %v508
    %517 = vmatprep.subr.bf16.mxu0 0
    %518 = vmatpush1.bf16.msra.mxu0 %v509
    %519 = vmatprep.subr.bf16.mxu0 0
    %520 = vmatpush1.bf16.msra.mxu0 0
    %521 = vmatprep.subr.bf16.mxu0 0
    %522 = vmatpush1.bf16.msra.mxu0 0
    %523 = vmatprep.subr.bf16.mxu0 0
    %524 = vmatpush1.bf16.msra.mxu0 0
    %525 = vmatprep.subr.bf16.mxu0 0
    %526 = vmatpush1.bf16.msra.mxu0 0
    %527 = vmatprep.subr.bf16.mxu0 0
    %528 = vmatpush1.bf16.msra.mxu0 0
    %529 = vmatprep.subr.bf16.mxu0 0
    %530 = vmatpush1.bf16.msra.mxu0 0
    %531 = vmatprep.subr.bf16.mxu0 0
    %532 = vmatpush1.bf16.msra.mxu0 0
    %533 = vmatprep.subr.bf16.mxu0 0
    %534 = vmatpush1.bf16.msra.mxu0 0
    %535 = vmatprep.subr.bf16.mxu0 0
    %536 = vmatpush1.bf16.msra.mxu0 0
    %537 = vmatprep.subr.bf16.mxu0 0
    %538 = vmatpush1.bf16.msra.mxu0 0
    %539 = vmatprep.subr.bf16.mxu0 0
    %540 = vmatpush1.bf16.msra.mxu0 0
    %541 = vmatprep.subr.bf16.mxu0 0
    %542 = vmatpush1.bf16.msra.mxu0 0
    %543 = vmatprep.subr.bf16.mxu0 0
    %544 = vmatpush1.bf16.msra.mxu0 0
    %545 = vmatprep.subr.bf16.mxu0 0
    %546 = vmatpush1.bf16.msra.mxu0 0
    %547 = vmatprep.mubr.bf16.mxu0 0
    %548 = vmatmul.mubr.bf16.gmra.mrb[0].mxu0 %v513
    %v549 = vpop.f32.mrb[0].mxu0
    %v550 = vadd.f32 %v499, %v549
    %v551 = vpop.f32.mrb[0].mxu0
    %v552 = vpop.f32.mrb[0].mxu0
    %v553 = vpop.f32.mrb[0].mxu0
    %554 = vdwg.mxu0
    %555 = vst.msk [vmem:[#allocation2] sm:$0xff] %vm110, %v550
    // Predicated region
    $region22: #{tpu_custom_call.1} parent=1 // pred_check
      _
    $region23: #{tpu_custom_call.1} parent=1 // pred_check_branch
      %557 = sbr.rel (0) target = $region25
    $region24: #{tpu_custom_call.1} parent=1 // pred_region
      %s559 = ssub.s32 128, 128
      %560 = vsyncadd [#allocation3], %s559
      %s562 = sshll.u32 [#allocation2], 4
      %s563 = int_to_ptr.vmem [resolvable:$true] %s562
      %565 = dma.vmem_to_hbm [thread:$0]  %s563, 128, %s5, [#allocation3]
    $region25: #{tpu_custom_call.1} parent=1 // pred_fallthru
      _
    // Predicated region
    $region26: #{tpu_custom_call.1} parent=1 // pred_check
      _
    $region27: #{tpu_custom_call.1} parent=1 // pred_check_branch
      %567 = sbr.rel (0) target = $region29
    $region28: #{tpu_custom_call.1} parent=1 // pred_region
      %568 = dma.done [#allocation3], 128
    $region29: #{tpu_custom_call.1} parent=1 // pred_fallthru
      _
    %569 = vsyncpa [#allocation3], 1

</llo_original>
